<compile_context>
chip_gen: v7x
topology: tpu7x:2x2x1
jax: 0.10.0
libtpu: 0.0.40
codegen_flags: <defaults>
</compile_context>

<pallas_src>
import jax
import jax.numpy as jnp
from jax.experimental import pallas as pl
from jax.experimental.pallas import tpu as pltpu


def _coord_row_vectors(h, w, normalize):
    """Flattened coordinate weights matching the PyTorch module:
    torch.meshgrid(vx(w), vy(h)) (indexing='ij') then .flatten():
        xc.flatten()[k] = vx[k // h]   (multiplies into y_mean)
        yc.flatten()[k] = vy[k % h]    (multiplies into x_mean)
    """
    if normalize:
        vx = jnp.linspace(-1.0, 1.0, w, dtype=jnp.float32)
        vy = jnp.linspace(-1.0, 1.0, h, dtype=jnp.float32)
    else:
        vx = jnp.arange(w, dtype=jnp.float32)
        vy = jnp.arange(h, dtype=jnp.float32)
    wx = jnp.repeat(vx, h)   # value depends on k // h
    wy = jnp.tile(vy, w)     # value depends on k % h
    return wx, wy


def _coef_matrix(h, w, normalize):
    """(HW, 128) MXU coefficient matrix: columns [ones, wx, wy, 0...]."""
    hw = h * w
    wx, wy = _coord_row_vectors(h, w, normalize)
    coef = jnp.zeros((hw, 128), dtype=jnp.float32)
    coef = coef.at[:, 0].set(1.0)
    coef = coef.at[:, 1].set(wx)
    coef = coef.at[:, 2].set(wy)
    return coef


def _ssam_kernel(scale_ref, coef_ref, x_ref, out_ref):
    # x_ref: (rt, HW) block of rows; one row == one (b, c) feature map.
    x = x_ref[...].astype(jnp.float32)
    z = x * scale_ref[0]                              # scale = H*W / temperature (SMEM scalar)
    # Numerically-stable softmax statistics (single pass over the tile).
    m = jnp.max(z, axis=-1, keepdims=True)            # (rt, 1)
    e = jnp.exp(z - m)                                # (rt, HW), EUP
    # All three lane reductions in one MXU pass: res[:,0]=denom,
    # res[:,1]=sum(e*wx), res[:,2]=sum(e*wy). f32/HIGHEST so coordinates up to
    # W are not quantized to bf16.
    res = jnp.dot(e, coef_ref[...],
                  preferred_element_type=jnp.float32,
                  precision=jax.lax.Precision.HIGHEST)   # (rt, 128)
    denom = res[:, 0:1]
    num_y = res[:, 1:2]                               # weighted by wx -> y_mean
    num_x = res[:, 2:3]                               # weighted by wy -> x_mean
    # Exact reciprocal (VALU divide) on a tiny (rt, 1) vector; normalization is
    # applied only to the reduction results, never to the full tile.
    inv = pl.reciprocal(denom, approx=False)
    out_ref[:, 0:1] = (num_x * inv).astype(out_ref.dtype)
    out_ref[:, 1:2] = (num_y * inv).astype(out_ref.dtype)


def spatial_soft_argmax(x, temperature, *, normalize=False, row_block=512):
    """Fused spatial soft-argmax. x: (B, C, H, W); temperature: shape-(1,) param."""
    B, C, H, W = x.shape
    HW = H * W
    rows = B * C
    xf = x.reshape(rows, HW)                          # lane-dense slab
    itemsize = jnp.dtype(x.dtype).itemsize

    scale = (jnp.float32(HW) / temperature.astype(jnp.float32)).reshape(1)
    coef = _coef_matrix(H, W, normalize)

    # --- Row-tile selection (VMEM- and generation-aware) ------------------
    # Keep the double-buffered x stream within a budget that fits every
    # generation's physical VMEM (v7x: 64 MiB per TC).
    try:
        vmem_cap = int(pltpu.get_tpu_info().vmem_capacity_bytes)
    except Exception:  # interpret mode / older runtimes
        vmem_cap = 64 * 1024 * 1024
    x_budget = min((vmem_cap * 5) // 8, 40 * 1024 * 1024)

    align = 16 if x.dtype == jnp.bfloat16 else 8      # bf16 sublane packing
    rows_aligned = -(-rows // align) * align

    max_rt_by_vmem = max(align, (x_budget // (2 * HW * itemsize)) // align * align)
    rt = min(row_block, max_rt_by_vmem, rows_aligned)
    rt = max(align, (rt // align) * align)
    # Feed both v7x TensorCores: guarantee >= 2 parallel grid steps when there
    # is enough work to split.
    if rows_aligned >= 2 * align and -(-rows_aligned // rt) < 2:
        rt = max(align, (rows_aligned // 2) // align * align)

    num_blocks = -(-rows_aligned // rt)
    rows_padded = num_blocks * rt
    if rows_padded != rows:
        # Zero rows are numerically safe (softmax of zeros); results sliced off.
        xf = jnp.pad(xf, ((0, rows_padded - rows), (0, 0)))
    grid = (num_blocks,)

    # TODO(synk): for HW so large that even an `align`-row tile exceeds VMEM,
    # add a second "arbitrary" grid axis over HW with online-softmax
    # accumulators (m, l, num_x, num_y in VMEM scratch, pl.when init/finalize).

    # Scoped-VMEM limit: double-buffered x tile + coef + outputs + slack,
    # clamped below v7x's 64 MiB physical VMEM.
    vmem_need = 2 * rt * HW * itemsize + HW * 128 * 4 + 4 * rt * 2 * 4
    vmem_limit_bytes = int(min(max(vmem_need + (4 << 20), 16 << 20), 56 << 20))

    cost = pl.CostEstimate(
        flops=2 * rows_padded * HW * 128 + 4 * rows_padded * HW,
        transcendentals=rows_padded * HW,
        bytes_accessed=rows_padded * HW * itemsize + HW * 128 * 4 + rows_padded * 2 * 4,
    )

    out = pl.pallas_call(
        _ssam_kernel,
        out_shape=jax.ShapeDtypeStruct((rows_padded, 2), jnp.float32),
        grid_spec=pltpu.PrefetchScalarGridSpec(
            num_scalar_prefetch=0,
            grid=grid,
            in_specs=[
                pl.BlockSpec(memory_space=pltpu.MemorySpace.SMEM),   # scale (scalar)
                pl.BlockSpec((HW, 128), lambda i: (0, 0)),           # coef (resident)
                pl.BlockSpec((rt, HW), lambda i: (i, 0)),            # x rows
            ],
            out_specs=pl.BlockSpec((rt, 2), lambda i: (i, 0)),       # [x_mean, y_mean]
        ),
        compiler_params=pltpu.CompilerParams(
            dimension_semantics=("parallel",),
            vmem_limit_bytes=vmem_limit_bytes,
        ),
        cost_estimate=cost,
    )(scale, coef, xf)

    # out columns already match torch.cat([x_mean, y_mean], dim=1); just reshape.
    return out[:rows].reshape(B, 2 * C).astype(x.dtype)


def spatial_soft_argmax_ref(x, temperature, *, normalize=False):
    # Pure-JAX reference matching the PyTorch forward.
    B, C, H, W = x.shape
    HW = H * W
    z = (x.astype(jnp.float32) *
         (HW / temperature.astype(jnp.float32))).reshape(B * C, HW)
    p = jax.nn.softmax(z, axis=-1)
    wx, wy = _coord_row_vectors(H, W, normalize)
    y_mean = jnp.sum(p * wx[None, :], axis=-1, keepdims=True)
    x_mean = jnp.sum(p * wy[None, :], axis=-1, keepdims=True)
    return jnp.concatenate([x_mean, y_mean], axis=1).reshape(B, 2 * C).astype(x.dtype)


if __name__ == "__main__":
    key = jax.random.PRNGKey(0)
    B, C, H, W = 2, 4, 16, 16
    x = jax.random.normal(key, (B, C, H, W), dtype=jnp.float32)
    temperature = jnp.ones((1,), dtype=jnp.float32)   # nn.Parameter(torch.ones(1)) init

    out = spatial_soft_argmax(x, temperature, normalize=False)
    out = jax.block_until_ready(out)
    assert out.shape == (B, 2 * C)
    ref = spatial_soft_argmax_ref(x, temperature, normalize=False)
    assert jnp.allclose(out, ref, atol=1e-4, rtol=1e-4), "mismatch (normalize=False)"

    out_n = jax.block_until_ready(spatial_soft_argmax(x, temperature, normalize=True))
    ref_n = spatial_soft_argmax_ref(x, temperature, normalize=True)
    assert jnp.allclose(out_n, ref_n, atol=1e-4, rtol=1e-4), "mismatch (normalize=True)"

    print("KERNEL_OK")
</pallas_src>

<mosaic_0001>
module attributes {stable_mosaic.version = 11 : i64} {
  func.func @_ssam_kernel(%arg0: i32, %arg1: memref<1xf32, #tpu.memory_space<smem>>, %arg2: memref<256x128xf32, #tpu.memory_space<vmem>>, %arg3: memref<8x256xf32, #tpu.memory_space<vmem>>, %arg4: memref<8x2xf32, #tpu.memory_space<vmem>>) attributes {dimension_semantics = [#tpu.dimension_semantics<parallel>], iteration_bounds = array<i64: 1>, scalar_prefetch = 0 : i64, scratch_operands = 0 : i64, tpu.core_type = #tpu.core_type<tc>, window_params = [{transform_indices = @transform_0, window_bounds = array<i64: 1>}, {pipeline_mode = #tpu.pipeline_mode<synchronous>, transform_indices = @transform_1, window_bounds = array<i64: 256, 128>}, {transform_indices = @transform_2, window_bounds = array<i64: 8, 256>}, {transform_indices = @transform_3, window_bounds = array<i64: 8, 2>}]} {
    %c0 = arith.constant 0 : index
    %c0_0 = arith.constant 0 : index
    %0 = vector.load %arg3[%c0, %c0_0] : memref<8x256xf32, #tpu.memory_space<vmem>>, vector<8x256xf32>
    %c0_1 = arith.constant 0 : index
    %1 = memref.load %arg1[%c0_1] : memref<1xf32, #tpu.memory_space<smem>>
    %2 = vector.broadcast %1 : f32 to vector<8x256xf32>
    %3 = arith.mulf %0, %2 : vector<8x256xf32>
    %cst = arith.constant dense<0xFF800000> : vector<8xf32>
    %4 = vector.multi_reduction <maximumf>, %3, %cst [1] : vector<8x256xf32> to vector<8xf32>
    %5 = vector.shape_cast %4 : vector<8xf32> to vector<8x1xf32>
    %6 = vector.broadcast %5 : vector<8x1xf32> to vector<8x256xf32>
    %7 = arith.subf %3, %6 : vector<8x256xf32>
    %8 = math.exp %7 : vector<8x256xf32>
    %c0_2 = arith.constant 0 : index
    %c0_3 = arith.constant 0 : index
    %9 = vector.load %arg2[%c0_2, %c0_3] : memref<256x128xf32, #tpu.memory_space<vmem>>, vector<256x128xf32>
    %cst_4 = arith.constant dense<0.000000e+00> : vector<8x128xf32>
    %10 = tpu.matmul %8, %9, %cst_4 {dimension_numbers = #tpu.dot_dimension_numbers<[1], [0], [0], [1], [0, 0, 1, 1], [], []>, precision = #tpu.contract_precision<fp32>} : vector<8x256xf32>, vector<256x128xf32>, vector<8x128xf32> -> vector<8x128xf32>
    %11 = vector.extract_strided_slice %10 {offsets = [0, 0], sizes = [8, 1], strides = [1, 1]} : vector<8x128xf32> to vector<8x1xf32>
    %12 = vector.extract_strided_slice %10 {offsets = [0, 1], sizes = [8, 1], strides = [1, 1]} : vector<8x128xf32> to vector<8x1xf32>
    %13 = vector.extract_strided_slice %10 {offsets = [0, 2], sizes = [8, 1], strides = [1, 1]} : vector<8x128xf32> to vector<8x1xf32>
    %14 = tpu.reciprocal %11 : vector<8x1xf32> -> vector<8x1xf32>
    %15 = arith.mulf %13, %14 : vector<8x1xf32>
    %c0_5 = arith.constant 0 : index
    %c0_6 = arith.constant 0 : index
    %16 = vector.load %arg4[%c0_5, %c0_6] : memref<8x2xf32, #tpu.memory_space<vmem>>, vector<8x1xf32>
    tpu.vector_store %arg4[%c0_5, %c0_6], %15 {strides = array<i32>} : memref<8x2xf32, #tpu.memory_space<vmem>>, vector<8x1xf32>,
    %17 = arith.mulf %12, %14 : vector<8x1xf32>
    %c0_7 = arith.constant 0 : index
    %c1 = arith.constant 1 : index
    %18 = vector.load %arg4[%c0_7, %c1] : memref<8x2xf32, #tpu.memory_space<vmem>>, vector<8x1xf32>
    tpu.vector_store %arg4[%c0_7, %c1], %17 {strides = array<i32>} : memref<8x2xf32, #tpu.memory_space<vmem>>, vector<8x1xf32>,
    return
  }
  func.func @transform_0(%arg0: i32) -> i32 {
    %c0_i32 = arith.constant 0 : i32
    %c0_i32_0 = arith.constant 0 : i32
    return %c0_i32 : i32
  }
  func.func @transform_1(%arg0: i32) -> (i32, i32) {
    %c0_i32 = arith.constant 0 : i32
    %c0_i32_0 = arith.constant 0 : i32
    %c0_i32_1 = arith.constant 0 : i32
    return %c0_i32, %c0_i32_0 : i32, i32
  }
  func.func @transform_2(%arg0: i32) -> (i32, i32) {
    %c0_i32 = arith.constant 0 : i32
    %c0_i32_0 = arith.constant 0 : i32
    return %arg0, %c0_i32 : i32, i32
  }
  func.func @transform_3(%arg0: i32) -> (i32, i32) {
    %c0_i32 = arith.constant 0 : i32
    %c0_i32_0 = arith.constant 0 : i32
    return %arg0, %c0_i32 : i32, i32
  }
}

</mosaic_0001>

<llo_original>
// kernel: tpu_custom_call.1
$region0: #{tpu_custom_call.1}
  #allocation0 [shape = 'u32[]', space=smem, size = 0x4, offset = 0x4, fixed_abs, tag = 'smem constant byte address 0x4 - core index']
  #allocation1 [shape = 'u32[144,128]{1,0:T(1,128)}', space=vmem, size = 0x12000, scoped, tag = 'internal scratch']
  #allocation2 [shape = 'f32[1]{0:T(128)S(6)}', space=smem, size = 0x200, scoped, tag = 'scoped memory for tpu_custom_call.1']
  %s0 = inlined_call_operand.<no memory space> [shape: f32[1], index: 0, kind: input, shape index: {}]
  %s1 = inlined_call_operand.hbm [shape: f32[256,128], index: 1, kind: input, shape index: {}]
  %s2 = inlined_call_operand.hbm [shape: f32[8,256], index: 2, kind: input, shape index: {}]
  %s3 = inlined_call_operand.vmem [shape: f32[8,2], index: 3, kind: output, shape index: {}]
  %s4 = sld [smem:[#allocation0]]
  $region30: #{tpu_custom_call.1} parent=0
    _
  %s6 = ssub.s32 1, %s4
  %s7 = scalar_select 0, %s6, %s4
  %8 = sst [smem:[#allocation2]] %s0
  $region1: #{tpu_custom_call.1} parent=0
    #allocation3 [shape = 'u8[131072]{0}', space=vmem, size = 0x20000, scoped, tag = 'input window, operand 1, single buffered']
    #allocation4 [shape = 's32[1]{0}', space=sflag, size = 0x4, scoped, tag = 'scoped memory for tpu_custom_call.1']
    #allocation5 [shape = 'u8[8192]{0}', space=vmem, size = 0x2000, scoped, tag = 'input window, operand 2, single buffered']
    #allocation6 [shape = 's32[1]{0}', space=sflag, size = 0x4, scoped, tag = 'scoped memory for tpu_custom_call.1']
    %9 = vsyncpa [#allocation4], 0
    %10 = vsyncpa [#allocation6], 0
    // Predicated region
    $region2: #{tpu_custom_call.1} parent=1 // pred_check
      _
    $region3: #{tpu_custom_call.1} parent=1 // pred_check_branch
      %12 = sbr.rel (0) target = $region5
    $region4: #{tpu_custom_call.1} parent=1 // pred_region
      _
    $region5: #{tpu_custom_call.1} parent=1 // pred_fallthru
      _
    // Predicated region
    $region6: #{tpu_custom_call.1} parent=1 // pred_check
      _
    $region7: #{tpu_custom_call.1} parent=1 // pred_check_branch
      %14 = sbr.rel (0) target = $region9
    $region8: #{tpu_custom_call.1} parent=1 // pred_region
      %s16 = ssub.s32 4096, 4096
      %17 = vsyncadd [#allocation4], %s16
      %s18 = sshll.u32 [#allocation3], 4
      %s19 = int_to_ptr.vmem [resolvable:$true] %s18
      %24 = dma.hbm_to_vmem [thread:$0]  %s1, 4096, %s19, [#allocation4], 128, 128, 8
    $region9: #{tpu_custom_call.1} parent=1 // pred_fallthru
      _
    // Predicated region
    $region10: #{tpu_custom_call.1} parent=1 // pred_check
      _
    $region11: #{tpu_custom_call.1} parent=1 // pred_check_branch
      %26 = sbr.rel (0) target = $region13
    $region12: #{tpu_custom_call.1} parent=1 // pred_region
      %s28 = ssub.s32 256, 256
      %29 = vsyncadd [#allocation6], %s28
      %s31 = sshll.u32 [#allocation5], 4
      %s32 = int_to_ptr.vmem [resolvable:$true] %s31
      %34 = dma.hbm_to_vmem [thread:$0]  %s2, 256, %s32, [#allocation6]
    $region13: #{tpu_custom_call.1} parent=1 // pred_fallthru
      _
    // Predicated region
    $region14: #{tpu_custom_call.1} parent=1 // pred_check
      _
    $region15: #{tpu_custom_call.1} parent=1 // pred_check_branch
      %36 = sbr.rel (0) target = $region17
    $region16: #{tpu_custom_call.1} parent=1 // pred_region
      %37 = dma.done [#allocation4], 4096
    $region17: #{tpu_custom_call.1} parent=1 // pred_fallthru
      _
    // Predicated region
    $region18: #{tpu_custom_call.1} parent=1 // pred_check
      _
    $region19: #{tpu_custom_call.1} parent=1 // pred_check_branch
      %39 = sbr.rel (0) target = $region21
    $region20: #{tpu_custom_call.1} parent=1 // pred_region
      %40 = dma.done [#allocation6], 256
    $region21: #{tpu_custom_call.1} parent=1 // pred_fallthru
      _
    %v41 = vld [vmem:[#allocation5] sm:$0xff]
    %v42 = vld [vmem:[#allocation5 + $0x8] sm:$0xff]
    %s43 = sld [smem:[#allocation2]]
    %v44 = vstv %s43
    %v45 = vmul.f32 %v41, %v44
    %v46 = vmul.f32 %v42, %v44
    %v47 = vmax.f32 %v45, %v46
    %48 = vmax.xlane.f32.xlu0 %v47
    %v49 = vpop.xlane.xlu0 %48
    %v50 = vsub.f32 %v45, %v49
    %v51 = vsub.f32 %v46, %v49
    %v52 = vmul.f32 %v50, 1.442695
    %v53 = vpow.pop %v52
    %v54 = vmul.f32 %v51, 1.442695
    %v55 = vpow.pop %v54
    %v56 = vld [vmem:[#allocation3] sm:$0xff]
    %v57 = vld [vmem:[#allocation3 + $0x8] sm:$0xff]
    %v58 = vld [vmem:[#allocation3 + $0x10] sm:$0xff]
    %v59 = vld [vmem:[#allocation3 + $0x18] sm:$0xff]
    %v60 = vld [vmem:[#allocation3 + $0x20] sm:$0xff]
    %v61 = vld [vmem:[#allocation3 + $0x28] sm:$0xff]
    %v62 = vld [vmem:[#allocation3 + $0x30] sm:$0xff]
    %v63 = vld [vmem:[#allocation3 + $0x38] sm:$0xff]
    %v64 = vld [vmem:[#allocation3 + $0x40] sm:$0xff]
    %v65 = vld [vmem:[#allocation3 + $0x48] sm:$0xff]
    %v66 = vld [vmem:[#allocation3 + $0x50] sm:$0xff]
    %v67 = vld [vmem:[#allocation3 + $0x58] sm:$0xff]
    %v68 = vld [vmem:[#allocation3 + $0x60] sm:$0xff]
    %v69 = vld [vmem:[#allocation3 + $0x68] sm:$0xff]
    %v70 = vld [vmem:[#allocation3 + $0x70] sm:$0xff]
    %v71 = vld [vmem:[#allocation3 + $0x78] sm:$0xff]
    %v72 = vld [vmem:[#allocation3 + $0x80] sm:$0xff]
    %v73 = vld [vmem:[#allocation3 + $0x88] sm:$0xff]
    %v74 = vld [vmem:[#allocation3 + $0x90] sm:$0xff]
    %v75 = vld [vmem:[#allocation3 + $0x98] sm:$0xff]
    %v76 = vld [vmem:[#allocation3 + $0xa0] sm:$0xff]
    %v77 = vld [vmem:[#allocation3 + $0xa8] sm:$0xff]
    %v78 = vld [vmem:[#allocation3 + $0xb0] sm:$0xff]
    %v79 = vld [vmem:[#allocation3 + $0xb8] sm:$0xff]
    %v80 = vld [vmem:[#allocation3 + $0xc0] sm:$0xff]
    %v81 = vld [vmem:[#allocation3 + $0xc8] sm:$0xff]
    %v82 = vld [vmem:[#allocation3 + $0xd0] sm:$0xff]
    %v83 = vld [vmem:[#allocation3 + $0xd8] sm:$0xff]
    %v84 = vld [vmem:[#allocation3 + $0xe0] sm:$0xff]
    %v85 = vld [vmem:[#allocation3 + $0xe8] sm:$0xff]
    %v86 = vld [vmem:[#allocation3 + $0xf0] sm:$0xff]
    %v87 = vld [vmem:[#allocation3 + $0xf8] sm:$0xff]
    %88 = vmatprep.subr.mxu0 0.0
    %v89 = vand.u32 %v56, 4294901760
    %90 = vmatpush1.msra.mxu0 %v89
    %91 = vmatprep.subr.mxu0 0.0
    %v92 = vand.u32 %v57, 4294901760
    %93 = vmatpush1.msra.mxu0 %v92
    %94 = vmatprep.subr.mxu0 0.0
    %v95 = vand.u32 %v58, 4294901760
    %96 = vmatpush1.msra.mxu0 %v95
    %97 = vmatprep.subr.mxu0 0.0
    %v98 = vand.u32 %v59, 4294901760
    %99 = vmatpush1.msra.mxu0 %v98
    %100 = vmatprep.subr.mxu0 0.0
    %v101 = vand.u32 %v60, 4294901760
    %102 = vmatpush1.msra.mxu0 %v101
    %103 = vmatprep.subr.mxu0 0.0
    %v104 = vand.u32 %v61, 4294901760
    %105 = vmatpush1.msra.mxu0 %v104
    %106 = vmatprep.subr.mxu0 0.0
    %v107 = vand.u32 %v62, 4294901760
    %108 = vmatpush1.msra.mxu0 %v107
    %109 = vmatprep.subr.mxu0 0.0
    %v110 = vand.u32 %v63, 4294901760
    %111 = vmatpush1.msra.mxu0 %v110
    %112 = vmatprep.subr.mxu0 0.0
    %v113 = vand.u32 %v64, 4294901760
    %114 = vmatpush1.msra.mxu0 %v113
    %115 = vmatprep.subr.mxu0 0.0
    %v116 = vand.u32 %v65, 4294901760
    %117 = vmatpush1.msra.mxu0 %v116
    %118 = vmatprep.subr.mxu0 0.0
    %v119 = vand.u32 %v66, 4294901760
    %120 = vmatpush1.msra.mxu0 %v119
    %121 = vmatprep.subr.mxu0 0.0
    %v122 = vand.u32 %v67, 4294901760
    %123 = vmatpush1.msra.mxu0 %v122
    %124 = vmatprep.subr.mxu0 0.0
    %v125 = vand.u32 %v68, 4294901760
    %126 = vmatpush1.msra.mxu0 %v125
    %127 = vmatprep.subr.mxu0 0.0
    %v128 = vand.u32 %v69, 4294901760
    %129 = vmatpush1.msra.mxu0 %v128
    %130 = vmatprep.subr.mxu0 0.0
    %v131 = vand.u32 %v70, 4294901760
    %132 = vmatpush1.msra.mxu0 %v131
    %133 = vmatprep.subr.mxu0 0.0
    %v134 = vand.u32 %v71, 4294901760
    %135 = vmatpush1.msra.mxu0 %v134
    %136 = vmatprep.subr.mxu0 0.0
    %v137 = vand.u32 %v72, 4294901760
    %138 = vmatpush1.msra.mxu0 %v137
    %139 = vmatprep.subr.mxu0 0.0
    %v140 = vand.u32 %v73, 4294901760
    %141 = vmatpush1.msra.mxu0 %v140
    %142 = vmatprep.subr.mxu0 0.0
    %v143 = vand.u32 %v74, 4294901760
    %144 = vmatpush1.msra.mxu0 %v143
    %145 = vmatprep.subr.mxu0 0.0
    %v146 = vand.u32 %v75, 4294901760
    %147 = vmatpush1.msra.mxu0 %v146
    %148 = vmatprep.subr.mxu0 0.0
    %v149 = vand.u32 %v76, 4294901760
    %150 = vmatpush1.msra.mxu0 %v149
    %151 = vmatprep.subr.mxu0 0.0
    %v152 = vand.u32 %v77, 4294901760
    %153 = vmatpush1.msra.mxu0 %v152
    %154 = vmatprep.subr.mxu0 0.0
    %v155 = vand.u32 %v78, 4294901760
    %156 = vmatpush1.msra.mxu0 %v155
    %157 = vmatprep.subr.mxu0 0.0
    %v158 = vand.u32 %v79, 4294901760
    %159 = vmatpush1.msra.mxu0 %v158
    %160 = vmatprep.subr.mxu0 0.0
    %v161 = vand.u32 %v80, 4294901760
    %162 = vmatpush1.msra.mxu0 %v161
    %163 = vmatprep.subr.mxu0 0.0
    %v164 = vand.u32 %v81, 4294901760
    %165 = vmatpush1.msra.mxu0 %v164
    %166 = vmatprep.subr.mxu0 0.0
    %v167 = vand.u32 %v82, 4294901760
    %168 = vmatpush1.msra.mxu0 %v167
    %169 = vmatprep.subr.mxu0 0.0
    %v170 = vand.u32 %v83, 4294901760
    %171 = vmatpush1.msra.mxu0 %v170
    %172 = vmatprep.subr.mxu0 0.0
    %v173 = vand.u32 %v84, 4294901760
    %174 = vmatpush1.msra.mxu0 %v173
    %175 = vmatprep.subr.mxu0 0.0
    %v176 = vand.u32 %v85, 4294901760
    %177 = vmatpush1.msra.mxu0 %v176
    %178 = vmatprep.subr.mxu0 0.0
    %v179 = vand.u32 %v86, 4294901760
    %180 = vmatpush1.msra.mxu0 %v179
    %181 = vmatprep.subr.mxu0 0.0
    %v182 = vand.u32 %v87, 4294901760
    %183 = vmatpush1.msra.mxu0 %v182
    %v184 = vand.u32 %v55, 4294901760
    %v185 = vsub.f32 %v55, %v184
    %v186 = vand.u32 %v185, 4294901760
    %v187 = vsub.f32 %v185, %v186
    %v188 = vand.u32 %v187, 4294901760
    %189 = vmatprep.mubr.f32.mxu0 %v188
    %v190 = vand.u32 %v53, 4294901760
    %v191 = vsub.f32 %v53, %v190
    %v192 = vand.u32 %v191, 4294901760
    %v193 = vsub.f32 %v191, %v192
    %v194 = vand.u32 %v193, 4294901760
    %195 = vmatmul.mubr.f32.gmra.mrb[0].mxu0 %v194
    %v196 = vpop.f32.mrb[0].mxu0
    %v197 = vadd.f32 0.0, %v196
    %v198 = vpop.f32.mrb[0].mxu0
    %199 = vdwg.mxu0
    %200 = vmatprep.subr.mxu0 0.0
    %v201 = vand.u32 %v56, 4294901760
    %v202 = vsub.f32 %v56, %v201
    %v203 = vand.u32 %v202, 4294901760
    %v204 = vsub.f32 %v202, %v203
    %v205 = vand.u32 %v204, 4294901760
    %206 = vmatpush1.msra.mxu0 %v205
    %207 = vmatprep.subr.mxu0 0.0
    %v208 = vand.u32 %v57, 4294901760
    %v209 = vsub.f32 %v57, %v208
    %v210 = vand.u32 %v209, 4294901760
    %v211 = vsub.f32 %v209, %v210
    %v212 = vand.u32 %v211, 4294901760
    %213 = vmatpush1.msra.mxu0 %v212
    %214 = vmatprep.subr.mxu0 0.0
    %v215 = vand.u32 %v58, 4294901760
    %v216 = vsub.f32 %v58, %v215
    %v217 = vand.u32 %v216, 4294901760
    %v218 = vsub.f32 %v216, %v217
    %v219 = vand.u32 %v218, 4294901760
    %220 = vmatpush1.msra.mxu0 %v219
    %221 = vmatprep.subr.mxu0 0.0
    %v222 = vand.u32 %v59, 4294901760
    %v223 = vsub.f32 %v59, %v222
    %v224 = vand.u32 %v223, 4294901760
    %v225 = vsub.f32 %v223, %v224
    %v226 = vand.u32 %v225, 4294901760
    %227 = vmatpush1.msra.mxu0 %v226
    %228 = vmatprep.subr.mxu0 0.0
    %v229 = vand.u32 %v60, 4294901760
    %v230 = vsub.f32 %v60, %v229
    %v231 = vand.u32 %v230, 4294901760
    %v232 = vsub.f32 %v230, %v231
    %v233 = vand.u32 %v232, 4294901760
    %234 = vmatpush1.msra.mxu0 %v233
    %235 = vmatprep.subr.mxu0 0.0
    %v236 = vand.u32 %v61, 4294901760
    %v237 = vsub.f32 %v61, %v236
    %v238 = vand.u32 %v237, 4294901760
    %v239 = vsub.f32 %v237, %v238
    %v240 = vand.u32 %v239, 4294901760
    %241 = vmatpush1.msra.mxu0 %v240
    %242 = vmatprep.subr.mxu0 0.0
    %v243 = vand.u32 %v62, 4294901760
    %v244 = vsub.f32 %v62, %v243
    %v245 = vand.u32 %v244, 4294901760
    %v246 = vsub.f32 %v244, %v245
    %v247 = vand.u32 %v246, 4294901760
    %248 = vmatpush1.msra.mxu0 %v247
    %249 = vmatprep.subr.mxu0 0.0
    %v250 = vand.u32 %v63, 4294901760
    %v251 = vsub.f32 %v63, %v250
    %v252 = vand.u32 %v251, 4294901760
    %v253 = vsub.f32 %v251, %v252
    %v254 = vand.u32 %v253, 4294901760
    %255 = vmatpush1.msra.mxu0 %v254
    %256 = vmatprep.subr.mxu0 0.0
    %v257 = vand.u32 %v64, 4294901760
    %v258 = vsub.f32 %v64, %v257
    %v259 = vand.u32 %v258, 4294901760
    %v260 = vsub.f32 %v258, %v259
    %v261 = vand.u32 %v260, 4294901760
    %262 = vmatpush1.msra.mxu0 %v261
    %263 = vmatprep.subr.mxu0 0.0
    %v264 = vand.u32 %v65, 4294901760
    %v265 = vsub.f32 %v65, %v264
    %v266 = vand.u32 %v265, 4294901760
    %v267 = vsub.f32 %v265, %v266
    %v268 = vand.u32 %v267, 4294901760
    %269 = vmatpush1.msra.mxu0 %v268
    %270 = vmatprep.subr.mxu0 0.0
    %v271 = vand.u32 %v66, 4294901760
    %v272 = vsub.f32 %v66, %v271
    %v273 = vand.u32 %v272, 4294901760
    %v274 = vsub.f32 %v272, %v273
    %v275 = vand.u32 %v274, 4294901760
    %276 = vmatpush1.msra.mxu0 %v275
    %277 = vmatprep.subr.mxu0 0.0
    %v278 = vand.u32 %v67, 4294901760
    %v279 = vsub.f32 %v67, %v278
    %v280 = vand.u32 %v279, 4294901760
    %v281 = vsub.f32 %v279, %v280
    %v282 = vand.u32 %v281, 4294901760
    %283 = vmatpush1.msra.mxu0 %v282
    %284 = vmatprep.subr.mxu0 0.0
    %v285 = vand.u32 %v68, 4294901760
    %v286 = vsub.f32 %v68, %v285
    %v287 = vand.u32 %v286, 4294901760
    %v288 = vsub.f32 %v286, %v287
    %v289 = vand.u32 %v288, 4294901760
    %290 = vmatpush1.msra.mxu0 %v289
    %291 = vmatprep.subr.mxu0 0.0
    %v292 = vand.u32 %v69, 4294901760
    %v293 = vsub.f32 %v69, %v292
    %v294 = vand.u32 %v293, 4294901760
    %v295 = vsub.f32 %v293, %v294
    %v296 = vand.u32 %v295, 4294901760
    %297 = vmatpush1.msra.mxu0 %v296
    %298 = vmatprep.subr.mxu0 0.0
    %v299 = vand.u32 %v70, 4294901760
    %v300 = vsub.f32 %v70, %v299
    %v301 = vand.u32 %v300, 4294901760
    %v302 = vsub.f32 %v300, %v301
    %v303 = vand.u32 %v302, 4294901760
    %304 = vmatpush1.msra.mxu0 %v303
    %305 = vmatprep.subr.mxu0 0.0
    %v306 = vand.u32 %v71, 4294901760
    %v307 = vsub.f32 %v71, %v306
    %v308 = vand.u32 %v307, 4294901760
    %v309 = vsub.f32 %v307, %v308
    %v310 = vand.u32 %v309, 4294901760
    %311 = vmatpush1.msra.mxu0 %v310
    %312 = vmatprep.subr.mxu0 0.0
    %v313 = vand.u32 %v72, 4294901760
    %v314 = vsub.f32 %v72, %v313
    %v315 = vand.u32 %v314, 4294901760
    %v316 = vsub.f32 %v314, %v315
    %v317 = vand.u32 %v316, 4294901760
    %318 = vmatpush1.msra.mxu0 %v317
    %319 = vmatprep.subr.mxu0 0.0
    %v320 = vand.u32 %v73, 4294901760
    %v321 = vsub.f32 %v73, %v320
    %v322 = vand.u32 %v321, 4294901760
    %v323 = vsub.f32 %v321, %v322
    %v324 = vand.u32 %v323, 4294901760
    %325 = vmatpush1.msra.mxu0 %v324
    %326 = vmatprep.subr.mxu0 0.0
    %v327 = vand.u32 %v74, 4294901760
    %v328 = vsub.f32 %v74, %v327
    %v329 = vand.u32 %v328, 4294901760
    %v330 = vsub.f32 %v328, %v329
    %v331 = vand.u32 %v330, 4294901760
    %332 = vmatpush1.msra.mxu0 %v331
    %333 = vmatprep.subr.mxu0 0.0
    %v334 = vand.u32 %v75, 4294901760
    %v335 = vsub.f32 %v75, %v334
    %v336 = vand.u32 %v335, 4294901760
    %v337 = vsub.f32 %v335, %v336
    %v338 = vand.u32 %v337, 4294901760
    %339 = vmatpush1.msra.mxu0 %v338
    %340 = vmatprep.subr.mxu0 0.0
    %v341 = vand.u32 %v76, 4294901760
    %v342 = vsub.f32 %v76, %v341
    %v343 = vand.u32 %v342, 4294901760
    %v344 = vsub.f32 %v342, %v343
    %v345 = vand.u32 %v344, 4294901760
    %346 = vmatpush1.msra.mxu0 %v345
    %347 = vmatprep.subr.mxu0 0.0
    %v348 = vand.u32 %v77, 4294901760
    %v349 = vsub.f32 %v77, %v348
    %v350 = vand.u32 %v349, 4294901760
    %v351 = vsub.f32 %v349, %v350
    %v352 = vand.u32 %v351, 4294901760
    %353 = vmatpush1.msra.mxu0 %v352
    %354 = vmatprep.subr.mxu0 0.0
    %v355 = vand.u32 %v78, 4294901760
    %v356 = vsub.f32 %v78, %v355
    %v357 = vand.u32 %v356, 4294901760
    %v358 = vsub.f32 %v356, %v357
    %v359 = vand.u32 %v358, 4294901760
    %360 = vmatpush1.msra.mxu0 %v359
    %361 = vmatprep.subr.mxu0 0.0
    %v362 = vand.u32 %v79, 4294901760
    %v363 = vsub.f32 %v79, %v362
    %v364 = vand.u32 %v363, 4294901760
    %v365 = vsub.f32 %v363, %v364
    %v366 = vand.u32 %v365, 4294901760
    %367 = vmatpush1.msra.mxu0 %v366
    %368 = vmatprep.subr.mxu0 0.0
    %v369 = vand.u32 %v80, 4294901760
    %v370 = vsub.f32 %v80, %v369
    %v371 = vand.u32 %v370, 4294901760
    %v372 = vsub.f32 %v370, %v371
    %v373 = vand.u32 %v372, 4294901760
    %374 = vmatpush1.msra.mxu0 %v373
    %375 = vmatprep.subr.mxu0 0.0
    %v376 = vand.u32 %v81, 4294901760
    %v377 = vsub.f32 %v81, %v376
    %v378 = vand.u32 %v377, 4294901760
    %v379 = vsub.f32 %v377, %v378
    %v380 = vand.u32 %v379, 4294901760
    %381 = vmatpush1.msra.mxu0 %v380
    %382 = vmatprep.subr.mxu0 0.0
    %v383 = vand.u32 %v82, 4294901760
    %v384 = vsub.f32 %v82, %v383
    %v385 = vand.u32 %v384, 4294901760
    %v386 = vsub.f32 %v384, %v385
    %v387 = vand.u32 %v386, 4294901760
    %388 = vmatpush1.msra.mxu0 %v387
    %389 = vmatprep.subr.mxu0 0.0
    %v390 = vand.u32 %v83, 4294901760
    %v391 = vsub.f32 %v83, %v390
    %v392 = vand.u32 %v391, 4294901760
    %v393 = vsub.f32 %v391, %v392
    %v394 = vand.u32 %v393, 4294901760
    %395 = vmatpush1.msra.mxu0 %v394
    %396 = vmatprep.subr.mxu0 0.0
    %v397 = vand.u32 %v84, 4294901760
    %v398 = vsub.f32 %v84, %v397
    %v399 = vand.u32 %v398, 4294901760
    %v400 = vsub.f32 %v398, %v399
    %v401 = vand.u32 %v400, 4294901760
    %402 = vmatpush1.msra.mxu0 %v401
    %403 = vmatprep.subr.mxu0 0.0
    %v404 = vand.u32 %v85, 4294901760
    %v405 = vsub.f32 %v85, %v404
    %v406 = vand.u32 %v405, 4294901760
    %v407 = vsub.f32 %v405, %v406
    %v408 = vand.u32 %v407, 4294901760
    %409 = vmatpush1.msra.mxu0 %v408
    %410 = vmatprep.subr.mxu0 0.0
    %v411 = vand.u32 %v86, 4294901760
    %v412 = vsub.f32 %v86, %v411
    %v413 = vand.u32 %v412, 4294901760
    %v414 = vsub.f32 %v412, %v413
    %v415 = vand.u32 %v414, 4294901760
    %416 = vmatpush1.msra.mxu0 %v415
    %417 = vmatprep.subr.mxu0 0.0
    %v418 = vand.u32 %v87, 4294901760
    %v419 = vsub.f32 %v87, %v418
    %v420 = vand.u32 %v419, 4294901760
    %v421 = vsub.f32 %v419, %v420
    %v422 = vand.u32 %v421, 4294901760
    %423 = vmatpush1.msra.mxu0 %v422
    %v424 = vand.u32 %v55, 4294901760
    %425 = vmatprep.mubr.f32.mxu0 %v424
    %v426 = vand.u32 %v53, 4294901760
    %427 = vmatmul.mubr.f32.gmra.mrb[0].mxu0 %v426
    %v428 = vpop.f32.mrb[0].mxu0
    %v429 = vadd.f32 %v197, %v428
    %v430 = vpop.f32.mrb[0].mxu0
    %431 = vdwg.mxu0
    %432 = vmatprep.subr.mxu0 0.0
    %v433 = vand.u32 %v56, 4294901760
    %v434 = vsub.f32 %v56, %v433
    %435 = vmatpush1.msra.mxu0 %v434
    %436 = vmatprep.subr.mxu0 0.0
    %v437 = vand.u32 %v57, 4294901760
    %v438 = vsub.f32 %v57, %v437
    %439 = vmatpush1.msra.mxu0 %v438
    %440 = vmatprep.subr.mxu0 0.0
    %v441 = vand.u32 %v58, 4294901760
    %v442 = vsub.f32 %v58, %v441
    %443 = vmatpush1.msra.mxu0 %v442
    %444 = vmatprep.subr.mxu0 0.0
    %v445 = vand.u32 %v59, 4294901760
    %v446 = vsub.f32 %v59, %v445
    %447 = vmatpush1.msra.mxu0 %v446
    %448 = vmatprep.subr.mxu0 0.0
    %v449 = vand.u32 %v60, 4294901760
    %v450 = vsub.f32 %v60, %v449
    %451 = vmatpush1.msra.mxu0 %v450
    %452 = vmatprep.subr.mxu0 0.0
    %v453 = vand.u32 %v61, 4294901760
    %v454 = vsub.f32 %v61, %v453
    %455 = vmatpush1.msra.mxu0 %v454
    %456 = vmatprep.subr.mxu0 0.0
    %v457 = vand.u32 %v62, 4294901760
    %v458 = vsub.f32 %v62, %v457
    %459 = vmatpush1.msra.mxu0 %v458
    %460 = vmatprep.subr.mxu0 0.0
    %v461 = vand.u32 %v63, 4294901760
    %v462 = vsub.f32 %v63, %v461
    %463 = vmatpush1.msra.mxu0 %v462
    %464 = vmatprep.subr.mxu0 0.0
    %v465 = vand.u32 %v64, 4294901760
    %v466 = vsub.f32 %v64, %v465
    %467 = vmatpush1.msra.mxu0 %v466
    %468 = vmatprep.subr.mxu0 0.0
    %v469 = vand.u32 %v65, 4294901760
    %v470 = vsub.f32 %v65, %v469
    %471 = vmatpush1.msra.mxu0 %v470
    %472 = vmatprep.subr.mxu0 0.0
    %v473 = vand.u32 %v66, 4294901760
    %v474 = vsub.f32 %v66, %v473
    %475 = vmatpush1.msra.mxu0 %v474
    %476 = vmatprep.subr.mxu0 0.0
    %v477 = vand.u32 %v67, 4294901760
    %v478 = vsub.f32 %v67, %v477
    %479 = vmatpush1.msra.mxu0 %v478
    %480 = vmatprep.subr.mxu0 0.0
    %v481 = vand.u32 %v68, 4294901760
    %v482 = vsub.f32 %v68, %v481
    %483 = vmatpush1.msra.mxu0 %v482
    %484 = vmatprep.subr.mxu0 0.0
    %v485 = vand.u32 %v69, 4294901760
    %v486 = vsub.f32 %v69, %v485
    %487 = vmatpush1.msra.mxu0 %v486
    %488 = vmatprep.subr.mxu0 0.0
    %v489 = vand.u32 %v70, 4294901760
    %v490 = vsub.f32 %v70, %v489
    %491 = vmatpush1.msra.mxu0 %v490
    %492 = vmatprep.subr.mxu0 0.0
    %v493 = vand.u32 %v71, 4294901760
    %v494 = vsub.f32 %v71, %v493
    %495 = vmatpush1.msra.mxu0 %v494
    %496 = vmatprep.subr.mxu0 0.0
    %v497 = vand.u32 %v72, 4294901760
    %v498 = vsub.f32 %v72, %v497
    %499 = vmatpush1.msra.mxu0 %v498
    %500 = vmatprep.subr.mxu0 0.0
    %v501 = vand.u32 %v73, 4294901760
    %v502 = vsub.f32 %v73, %v501
    %503 = vmatpush1.msra.mxu0 %v502
    %504 = vmatprep.subr.mxu0 0.0
    %v505 = vand.u32 %v74, 4294901760
    %v506 = vsub.f32 %v74, %v505
    %507 = vmatpush1.msra.mxu0 %v506
    %508 = vmatprep.subr.mxu0 0.0
    %v509 = vand.u32 %v75, 4294901760
    %v510 = vsub.f32 %v75, %v509
    %511 = vmatpush1.msra.mxu0 %v510
    %512 = vmatprep.subr.mxu0 0.0
    %v513 = vand.u32 %v76, 4294901760
    %v514 = vsub.f32 %v76, %v513
    %515 = vmatpush1.msra.mxu0 %v514
    %516 = vmatprep.subr.mxu0 0.0
    %v517 = vand.u32 %v77, 4294901760
    %v518 = vsub.f32 %v77, %v517
    %519 = vmatpush1.msra.mxu0 %v518
    %520 = vmatprep.subr.mxu0 0.0
    %v521 = vand.u32 %v78, 4294901760
    %v522 = vsub.f32 %v78, %v521
    %523 = vmatpush1.msra.mxu0 %v522
    %524 = vmatprep.subr.mxu0 0.0
    %v525 = vand.u32 %v79, 4294901760
    %v526 = vsub.f32 %v79, %v525
    %527 = vmatpush1.msra.mxu0 %v526
    %528 = vmatprep.subr.mxu0 0.0
    %v529 = vand.u32 %v80, 4294901760
    %v530 = vsub.f32 %v80, %v529
    %531 = vmatpush1.msra.mxu0 %v530
    %532 = vmatprep.subr.mxu0 0.0
    %v533 = vand.u32 %v81, 4294901760
    %v534 = vsub.f32 %v81, %v533
    %535 = vmatpush1.msra.mxu0 %v534
    %536 = vmatprep.subr.mxu0 0.0
    %v537 = vand.u32 %v82, 4294901760
    %v538 = vsub.f32 %v82, %v537
    %539 = vmatpush1.msra.mxu0 %v538
    %540 = vmatprep.subr.mxu0 0.0
    %v541 = vand.u32 %v83, 4294901760
    %v542 = vsub.f32 %v83, %v541
    %543 = vmatpush1.msra.mxu0 %v542
    %544 = vmatprep.subr.mxu0 0.0
    %v545 = vand.u32 %v84, 4294901760
    %v546 = vsub.f32 %v84, %v545
    %547 = vmatpush1.msra.mxu0 %v546
    %548 = vmatprep.subr.mxu0 0.0
    %v549 = vand.u32 %v85, 4294901760
    %v550 = vsub.f32 %v85, %v549
    %551 = vmatpush1.msra.mxu0 %v550
    %552 = vmatprep.subr.mxu0 0.0
    %v553 = vand.u32 %v86, 4294901760
    %v554 = vsub.f32 %v86, %v553
    %555 = vmatpush1.msra.mxu0 %v554
    %556 = vmatprep.subr.mxu0 0.0
    %v557 = vand.u32 %v87, 4294901760
    %v558 = vsub.f32 %v87, %v557
    %559 = vmatpush1.msra.mxu0 %v558
    %v560 = vand.u32 %v55, 4294901760
    %v561 = vsub.f32 %v55, %v560
    %562 = vmatprep.mubr.f32.mxu0 %v561
    %v563 = vand.u32 %v53, 4294901760
    %v564 = vsub.f32 %v53, %v563
    %565 = vmatmul.mubr.f32.gmra.mrb[0].mxu0 %v564
    %v566 = vpop.f32.mrb[0].mxu0
    %v567 = vadd.f32 %v429, %v566
    %v568 = vpop.f32.mrb[0].mxu0
    %569 = vdwg.mxu0
    %570 = vmatprep.subr.mxu0 0.0
    %v571 = vand.u32 %v56, 4294901760
    %572 = vmatpush1.msra.mxu0 %v571
    %573 = vmatprep.subr.mxu0 0.0
    %v574 = vand.u32 %v57, 4294901760
    %575 = vmatpush1.msra.mxu0 %v574
    %576 = vmatprep.subr.mxu0 0.0
    %v577 = vand.u32 %v58, 4294901760
    %578 = vmatpush1.msra.mxu0 %v577
    %579 = vmatprep.subr.mxu0 0.0
    %v580 = vand.u32 %v59, 4294901760
    %581 = vmatpush1.msra.mxu0 %v580
    %582 = vmatprep.subr.mxu0 0.0
    %v583 = vand.u32 %v60, 4294901760
    %584 = vmatpush1.msra.mxu0 %v583
    %585 = vmatprep.subr.mxu0 0.0
    %v586 = vand.u32 %v61, 4294901760
    %587 = vmatpush1.msra.mxu0 %v586
    %588 = vmatprep.subr.mxu0 0.0
    %v589 = vand.u32 %v62, 4294901760
    %590 = vmatpush1.msra.mxu0 %v589
    %591 = vmatprep.subr.mxu0 0.0
    %v592 = vand.u32 %v63, 4294901760
    %593 = vmatpush1.msra.mxu0 %v592
    %594 = vmatprep.subr.mxu0 0.0
    %v595 = vand.u32 %v64, 4294901760
    %596 = vmatpush1.msra.mxu0 %v595
    %597 = vmatprep.subr.mxu0 0.0
    %v598 = vand.u32 %v65, 4294901760
    %599 = vmatpush1.msra.mxu0 %v598
    %600 = vmatprep.subr.mxu0 0.0
    %v601 = vand.u32 %v66, 4294901760
    %602 = vmatpush1.msra.mxu0 %v601
    %603 = vmatprep.subr.mxu0 0.0
    %v604 = vand.u32 %v67, 4294901760
    %605 = vmatpush1.msra.mxu0 %v604
    %606 = vmatprep.subr.mxu0 0.0
    %v607 = vand.u32 %v68, 4294901760
    %608 = vmatpush1.msra.mxu0 %v607
    %609 = vmatprep.subr.mxu0 0.0
    %v610 = vand.u32 %v69, 4294901760
    %611 = vmatpush1.msra.mxu0 %v610
    %612 = vmatprep.subr.mxu0 0.0
    %v613 = vand.u32 %v70, 4294901760
    %614 = vmatpush1.msra.mxu0 %v613
    %615 = vmatprep.subr.mxu0 0.0
    %v616 = vand.u32 %v71, 4294901760
    %617 = vmatpush1.msra.mxu0 %v616
    %618 = vmatprep.subr.mxu0 0.0
    %v619 = vand.u32 %v72, 4294901760
    %620 = vmatpush1.msra.mxu0 %v619
    %621 = vmatprep.subr.mxu0 0.0
    %v622 = vand.u32 %v73, 4294901760
    %623 = vmatpush1.msra.mxu0 %v622
    %624 = vmatprep.subr.mxu0 0.0
    %v625 = vand.u32 %v74, 4294901760
    %626 = vmatpush1.msra.mxu0 %v625
    %627 = vmatprep.subr.mxu0 0.0
    %v628 = vand.u32 %v75, 4294901760
    %629 = vmatpush1.msra.mxu0 %v628
    %630 = vmatprep.subr.mxu0 0.0
    %v631 = vand.u32 %v76, 4294901760
    %632 = vmatpush1.msra.mxu0 %v631
    %633 = vmatprep.subr.mxu0 0.0
    %v634 = vand.u32 %v77, 4294901760
    %635 = vmatpush1.msra.mxu0 %v634
    %636 = vmatprep.subr.mxu0 0.0
    %v637 = vand.u32 %v78, 4294901760
    %638 = vmatpush1.msra.mxu0 %v637
    %639 = vmatprep.subr.mxu0 0.0
    %v640 = vand.u32 %v79, 4294901760
    %641 = vmatpush1.msra.mxu0 %v640
    %642 = vmatprep.subr.mxu0 0.0
    %v643 = vand.u32 %v80, 4294901760
    %644 = vmatpush1.msra.mxu0 %v643
    %645 = vmatprep.subr.mxu0 0.0
    %v646 = vand.u32 %v81, 4294901760
    %647 = vmatpush1.msra.mxu0 %v646
    %648 = vmatprep.subr.mxu0 0.0
    %v649 = vand.u32 %v82, 4294901760
    %650 = vmatpush1.msra.mxu0 %v649
    %651 = vmatprep.subr.mxu0 0.0
    %v652 = vand.u32 %v83, 4294901760
    %653 = vmatpush1.msra.mxu0 %v652
    %654 = vmatprep.subr.mxu0 0.0
    %v655 = vand.u32 %v84, 4294901760
    %656 = vmatpush1.msra.mxu0 %v655
    %657 = vmatprep.subr.mxu0 0.0
    %v658 = vand.u32 %v85, 4294901760
    %659 = vmatpush1.msra.mxu0 %v658
    %660 = vmatprep.subr.mxu0 0.0
    %v661 = vand.u32 %v86, 4294901760
    %662 = vmatpush1.msra.mxu0 %v661
    %663 = vmatprep.subr.mxu0 0.0
    %v664 = vand.u32 %v87, 4294901760
    %665 = vmatpush1.msra.mxu0 %v664
    %v666 = vand.u32 %v55, 4294901760
    %v667 = vsub.f32 %v55, %v666
    %v668 = vand.u32 %v667, 4294901760
    %669 = vmatprep.mubr.f32.mxu0 %v668
    %v670 = vand.u32 %v53, 4294901760
    %v671 = vsub.f32 %v53, %v670
    %v672 = vand.u32 %v671, 4294901760
    %673 = vmatmul.mubr.f32.gmra.mrb[0].mxu0 %v672
    %v674 = vpop.f32.mrb[0].mxu0
    %v675 = vadd.f32 %v567, %v674
    %v676 = vpop.f32.mrb[0].mxu0
    %677 = vdwg.mxu0
    %678 = vmatprep.subr.mxu0 0.0
    %v679 = vand.u32 %v56, 4294901760
    %v680 = vsub.f32 %v56, %v679
    %v681 = vand.u32 %v680, 4294901760
    %682 = vmatpush1.msra.mxu0 %v681
    %683 = vmatprep.subr.mxu0 0.0
    %v684 = vand.u32 %v57, 4294901760
    %v685 = vsub.f32 %v57, %v684
    %v686 = vand.u32 %v685, 4294901760
    %687 = vmatpush1.msra.mxu0 %v686
    %688 = vmatprep.subr.mxu0 0.0
    %v689 = vand.u32 %v58, 4294901760
    %v690 = vsub.f32 %v58, %v689
    %v691 = vand.u32 %v690, 4294901760
    %692 = vmatpush1.msra.mxu0 %v691
    %693 = vmatprep.subr.mxu0 0.0
    %v694 = vand.u32 %v59, 4294901760
    %v695 = vsub.f32 %v59, %v694
    %v696 = vand.u32 %v695, 4294901760
    %697 = vmatpush1.msra.mxu0 %v696
    %698 = vmatprep.subr.mxu0 0.0
    %v699 = vand.u32 %v60, 4294901760
    %v700 = vsub.f32 %v60, %v699
    %v701 = vand.u32 %v700, 4294901760
    %702 = vmatpush1.msra.mxu0 %v701
    %703 = vmatprep.subr.mxu0 0.0
    %v704 = vand.u32 %v61, 4294901760
    %v705 = vsub.f32 %v61, %v704
    %v706 = vand.u32 %v705, 4294901760
    %707 = vmatpush1.msra.mxu0 %v706
    %708 = vmatprep.subr.mxu0 0.0
    %v709 = vand.u32 %v62, 4294901760
    %v710 = vsub.f32 %v62, %v709
    %v711 = vand.u32 %v710, 4294901760
    %712 = vmatpush1.msra.mxu0 %v711
    %713 = vmatprep.subr.mxu0 0.0
    %v714 = vand.u32 %v63, 4294901760
    %v715 = vsub.f32 %v63, %v714
    %v716 = vand.u32 %v715, 4294901760
    %717 = vmatpush1.msra.mxu0 %v716
    %718 = vmatprep.subr.mxu0 0.0
    %v719 = vand.u32 %v64, 4294901760
    %v720 = vsub.f32 %v64, %v719
    %v721 = vand.u32 %v720, 4294901760
    %722 = vmatpush1.msra.mxu0 %v721
    %723 = vmatprep.subr.mxu0 0.0
    %v724 = vand.u32 %v65, 4294901760
    %v725 = vsub.f32 %v65, %v724
    %v726 = vand.u32 %v725, 4294901760
    %727 = vmatpush1.msra.mxu0 %v726
    %728 = vmatprep.subr.mxu0 0.0
    %v729 = vand.u32 %v66, 4294901760
    %v730 = vsub.f32 %v66, %v729
    %v731 = vand.u32 %v730, 4294901760
    %732 = vmatpush1.msra.mxu0 %v731
    %733 = vmatprep.subr.mxu0 0.0
    %v734 = vand.u32 %v67, 4294901760
    %v735 = vsub.f32 %v67, %v734
    %v736 = vand.u32 %v735, 4294901760
    %737 = vmatpush1.msra.mxu0 %v736
    %738 = vmatprep.subr.mxu0 0.0
    %v739 = vand.u32 %v68, 4294901760
    %v740 = vsub.f32 %v68, %v739
    %v741 = vand.u32 %v740, 4294901760
    %742 = vmatpush1.msra.mxu0 %v741
    %743 = vmatprep.subr.mxu0 0.0
    %v744 = vand.u32 %v69, 4294901760
    %v745 = vsub.f32 %v69, %v744
    %v746 = vand.u32 %v745, 4294901760
    %747 = vmatpush1.msra.mxu0 %v746
    %748 = vmatprep.subr.mxu0 0.0
    %v749 = vand.u32 %v70, 4294901760
    %v750 = vsub.f32 %v70, %v749
    %v751 = vand.u32 %v750, 4294901760
    %752 = vmatpush1.msra.mxu0 %v751
    %753 = vmatprep.subr.mxu0 0.0
    %v754 = vand.u32 %v71, 4294901760
    %v755 = vsub.f32 %v71, %v754
    %v756 = vand.u32 %v755, 4294901760
    %757 = vmatpush1.msra.mxu0 %v756
    %758 = vmatprep.subr.mxu0 0.0
    %v759 = vand.u32 %v72, 4294901760
    %v760 = vsub.f32 %v72, %v759
    %v761 = vand.u32 %v760, 4294901760
    %762 = vmatpush1.msra.mxu0 %v761
    %763 = vmatprep.subr.mxu0 0.0
    %v764 = vand.u32 %v73, 4294901760
    %v765 = vsub.f32 %v73, %v764
    %v766 = vand.u32 %v765, 4294901760
    %767 = vmatpush1.msra.mxu0 %v766
    %768 = vmatprep.subr.mxu0 0.0
    %v769 = vand.u32 %v74, 4294901760
    %v770 = vsub.f32 %v74, %v769
    %v771 = vand.u32 %v770, 4294901760
    %772 = vmatpush1.msra.mxu0 %v771
    %773 = vmatprep.subr.mxu0 0.0
    %v774 = vand.u32 %v75, 4294901760
    %v775 = vsub.f32 %v75, %v774
    %v776 = vand.u32 %v775, 4294901760
    %777 = vmatpush1.msra.mxu0 %v776
    %778 = vmatprep.subr.mxu0 0.0
    %v779 = vand.u32 %v76, 4294901760
    %v780 = vsub.f32 %v76, %v779
    %v781 = vand.u32 %v780, 4294901760
    %782 = vmatpush1.msra.mxu0 %v781
    %783 = vmatprep.subr.mxu0 0.0
    %v784 = vand.u32 %v77, 4294901760
    %v785 = vsub.f32 %v77, %v784
    %v786 = vand.u32 %v785, 4294901760
    %787 = vmatpush1.msra.mxu0 %v786
    %788 = vmatprep.subr.mxu0 0.0
    %v789 = vand.u32 %v78, 4294901760
    %v790 = vsub.f32 %v78, %v789
    %v791 = vand.u32 %v790, 4294901760
    %792 = vmatpush1.msra.mxu0 %v791
    %793 = vmatprep.subr.mxu0 0.0
    %v794 = vand.u32 %v79, 4294901760
    %v795 = vsub.f32 %v79, %v794
    %v796 = vand.u32 %v795, 4294901760
    %797 = vmatpush1.msra.mxu0 %v796
    %798 = vmatprep.subr.mxu0 0.0
    %v799 = vand.u32 %v80, 4294901760
    %v800 = vsub.f32 %v80, %v799
    %v801 = vand.u32 %v800, 4294901760
    %802 = vmatpush1.msra.mxu0 %v801
    %803 = vmatprep.subr.mxu0 0.0
    %v804 = vand.u32 %v81, 4294901760
    %v805 = vsub.f32 %v81, %v804
    %v806 = vand.u32 %v805, 4294901760
    %807 = vmatpush1.msra.mxu0 %v806
    %808 = vmatprep.subr.mxu0 0.0
    %v809 = vand.u32 %v82, 4294901760
    %v810 = vsub.f32 %v82, %v809
    %v811 = vand.u32 %v810, 4294901760
    %812 = vmatpush1.msra.mxu0 %v811
    %813 = vmatprep.subr.mxu0 0.0
    %v814 = vand.u32 %v83, 4294901760
    %v815 = vsub.f32 %v83, %v814
    %v816 = vand.u32 %v815, 4294901760
    %817 = vmatpush1.msra.mxu0 %v816
    %818 = vmatprep.subr.mxu0 0.0
    %v819 = vand.u32 %v84, 4294901760
    %v820 = vsub.f32 %v84, %v819
    %v821 = vand.u32 %v820, 4294901760
    %822 = vmatpush1.msra.mxu0 %v821
    %823 = vmatprep.subr.mxu0 0.0
    %v824 = vand.u32 %v85, 4294901760
    %v825 = vsub.f32 %v85, %v824
    %v826 = vand.u32 %v825, 4294901760
    %827 = vmatpush1.msra.mxu0 %v826
    %828 = vmatprep.subr.mxu0 0.0
    %v829 = vand.u32 %v86, 4294901760
    %v830 = vsub.f32 %v86, %v829
    %v831 = vand.u32 %v830, 4294901760
    %832 = vmatpush1.msra.mxu0 %v831
    %833 = vmatprep.subr.mxu0 0.0
    %v834 = vand.u32 %v87, 4294901760
    %v835 = vsub.f32 %v87, %v834
    %v836 = vand.u32 %v835, 4294901760
    %837 = vmatpush1.msra.mxu0 %v836
    %v838 = vand.u32 %v55, 4294901760
    %839 = vmatprep.mubr.f32.mxu0 %v838
    %v840 = vand.u32 %v53, 4294901760
    %841 = vmatmul.mubr.f32.gmra.mrb[0].mxu0 %v840
    %v842 = vpop.f32.mrb[0].mxu0
    %v843 = vadd.f32 %v675, %v842
    %v844 = vpop.f32.mrb[0].mxu0
    %845 = vdwg.mxu0
    %846 = vmatprep.subr.mxu0 0.0
    %v847 = vand.u32 %v56, 4294901760
    %848 = vmatpush1.msra.mxu0 %v847
    %849 = vmatprep.subr.mxu0 0.0
    %v850 = vand.u32 %v57, 4294901760
    %851 = vmatpush1.msra.mxu0 %v850
    %852 = vmatprep.subr.mxu0 0.0
    %v853 = vand.u32 %v58, 4294901760
    %854 = vmatpush1.msra.mxu0 %v853
    %855 = vmatprep.subr.mxu0 0.0
    %v856 = vand.u32 %v59, 4294901760
    %857 = vmatpush1.msra.mxu0 %v856
    %858 = vmatprep.subr.mxu0 0.0
    %v859 = vand.u32 %v60, 4294901760
    %860 = vmatpush1.msra.mxu0 %v859
    %861 = vmatprep.subr.mxu0 0.0
    %v862 = vand.u32 %v61, 4294901760
    %863 = vmatpush1.msra.mxu0 %v862
    %864 = vmatprep.subr.mxu0 0.0
    %v865 = vand.u32 %v62, 4294901760
    %866 = vmatpush1.msra.mxu0 %v865
    %867 = vmatprep.subr.mxu0 0.0
    %v868 = vand.u32 %v63, 4294901760
    %869 = vmatpush1.msra.mxu0 %v868
    %870 = vmatprep.subr.mxu0 0.0
    %v871 = vand.u32 %v64, 4294901760
    %872 = vmatpush1.msra.mxu0 %v871
    %873 = vmatprep.subr.mxu0 0.0
    %v874 = vand.u32 %v65, 4294901760
    %875 = vmatpush1.msra.mxu0 %v874
    %876 = vmatprep.subr.mxu0 0.0
    %v877 = vand.u32 %v66, 4294901760
    %878 = vmatpush1.msra.mxu0 %v877
    %879 = vmatprep.subr.mxu0 0.0
    %v880 = vand.u32 %v67, 4294901760
    %881 = vmatpush1.msra.mxu0 %v880
    %882 = vmatprep.subr.mxu0 0.0
    %v883 = vand.u32 %v68, 4294901760
    %884 = vmatpush1.msra.mxu0 %v883
    %885 = vmatprep.subr.mxu0 0.0
    %v886 = vand.u32 %v69, 4294901760
    %887 = vmatpush1.msra.mxu0 %v886
    %888 = vmatprep.subr.mxu0 0.0
    %v889 = vand.u32 %v70, 4294901760
    %890 = vmatpush1.msra.mxu0 %v889
    %891 = vmatprep.subr.mxu0 0.0
    %v892 = vand.u32 %v71, 4294901760
    %893 = vmatpush1.msra.mxu0 %v892
    %894 = vmatprep.subr.mxu0 0.0
    %v895 = vand.u32 %v72, 4294901760
    %896 = vmatpush1.msra.mxu0 %v895
    %897 = vmatprep.subr.mxu0 0.0
    %v898 = vand.u32 %v73, 4294901760
    %899 = vmatpush1.msra.mxu0 %v898
    %900 = vmatprep.subr.mxu0 0.0
    %v901 = vand.u32 %v74, 4294901760
    %902 = vmatpush1.msra.mxu0 %v901
    %903 = vmatprep.subr.mxu0 0.0
    %v904 = vand.u32 %v75, 4294901760
    %905 = vmatpush1.msra.mxu0 %v904
    %906 = vmatprep.subr.mxu0 0.0
    %v907 = vand.u32 %v76, 4294901760
    %908 = vmatpush1.msra.mxu0 %v907
    %909 = vmatprep.subr.mxu0 0.0
    %v910 = vand.u32 %v77, 4294901760
    %911 = vmatpush1.msra.mxu0 %v910
    %912 = vmatprep.subr.mxu0 0.0
    %v913 = vand.u32 %v78, 4294901760
    %914 = vmatpush1.msra.mxu0 %v913
    %915 = vmatprep.subr.mxu0 0.0
    %v916 = vand.u32 %v79, 4294901760
    %917 = vmatpush1.msra.mxu0 %v916
    %918 = vmatprep.subr.mxu0 0.0
    %v919 = vand.u32 %v80, 4294901760
    %920 = vmatpush1.msra.mxu0 %v919
    %921 = vmatprep.subr.mxu0 0.0
    %v922 = vand.u32 %v81, 4294901760
    %923 = vmatpush1.msra.mxu0 %v922
    %924 = vmatprep.subr.mxu0 0.0
    %v925 = vand.u32 %v82, 4294901760
    %926 = vmatpush1.msra.mxu0 %v925
    %927 = vmatprep.subr.mxu0 0.0
    %v928 = vand.u32 %v83, 4294901760
    %929 = vmatpush1.msra.mxu0 %v928
    %930 = vmatprep.subr.mxu0 0.0
    %v931 = vand.u32 %v84, 4294901760
    %932 = vmatpush1.msra.mxu0 %v931
    %933 = vmatprep.subr.mxu0 0.0
    %v934 = vand.u32 %v85, 4294901760
    %935 = vmatpush1.msra.mxu0 %v934
    %936 = vmatprep.subr.mxu0 0.0
    %v937 = vand.u32 %v86, 4294901760
    %938 = vmatpush1.msra.mxu0 %v937
    %939 = vmatprep.subr.mxu0 0.0
    %v940 = vand.u32 %v87, 4294901760
    %941 = vmatpush1.msra.mxu0 %v940
    %v942 = vand.u32 %v55, 4294901760
    %943 = vmatprep.mubr.f32.mxu0 %v942
    %v944 = vand.u32 %v53, 4294901760
    %945 = vmatmul.mubr.f32.gmra.mrb[0].mxu0 %v944
    %v946 = vpop.f32.mrb[0].mxu0
    %v947 = vadd.f32 %v843, %v946
    %v948 = vpop.f32.mrb[0].mxu0
    %949 = vdwg.mxu0
    %v950 = vrcp.pop %v947
    %952 = vrot.lane.b32.xlu0 %v950, 2
    %v953 = vpop.permute.xlu0 %952
    %v955 = vmul.f32 %v947, %v953
    %957 = vrot.lane.b32.xlu0 %v955, 126
    %v958 = vpop.permute.xlu0 %957
    %vm960 = vcmask 7168
    %961 = vst.msk [vmem:[%s3] sm:$0xff] %vm960, %v958
    %962 = vrot.lane.b32.xlu0 %v950, 1
    %v963 = vpop.permute.xlu0 %962
    %v965 = vmul.f32 %v947, %v963
    %vm966 = vcmask 15368
    %967 = vst.msk [vmem:[%s3] sm:$0xff] %vm966, %v965
    // Predicated region
    $region22: #{tpu_custom_call.1} parent=1 // pred_check
      _
    $region23: #{tpu_custom_call.1} parent=1 // pred_check_branch
      %969 = sbr.rel (0) target = $region25
    $region24: #{tpu_custom_call.1} parent=1 // pred_region
      _
    $region25: #{tpu_custom_call.1} parent=1 // pred_fallthru
      _
    // Predicated region
    $region26: #{tpu_custom_call.1} parent=1 // pred_check
      _
    $region27: #{tpu_custom_call.1} parent=1 // pred_check_branch
      %971 = sbr.rel (0) target = $region29
    $region28: #{tpu_custom_call.1} parent=1 // pred_region
      _
    $region29: #{tpu_custom_call.1} parent=1 // pred_fallthru
      _
    %972 = vsyncpa [#allocation4], 1
    %973 = vsyncpa [#allocation6], 1

</llo_original>
